<compile_context>
chip_gen: v5e
topology: v5e:2x2
jax: 0.10.0
libtpu: 0.0.40
codegen_flags: <defaults>
</compile_context>

<pallas_src>
import math

import jax
import jax.numpy as jnp
from jax.experimental import pallas as pl
from jax.experimental.pallas import tpu as pltpu


def _round_up(x: int, m: int) -> int:
    return ((x + m - 1) // m) * m


def _toy_model_kernel(m_ref, b_ref, x_ref, o_ref):
    # m_ref: (R, R)   block-diagonal W^T W (f32), VMEM-resident across grid steps
    # b_ref: (R, 1)   bias column (f32), VMEM-resident
    # x_ref: (R, TB)  lane-dense activations: TB batch elements on the lane axis
    # o_ref: (R, TB)
    x = x_ref[...].astype(jnp.float32)
    acc = jnp.dot(
        m_ref[...],
        x,
        preferred_element_type=jnp.float32,
        precision=jax.lax.Precision.HIGHEST,
    )
    o_ref[...] = jnp.maximum(acc + b_ref[...], 0.0).astype(o_ref.dtype)


def toy_model_forward(features, W, b_final, *, block_batch: int = 8192):
    """features: [..., inst, feats]; W: [inst, hidden, feats]; b_final: [inst, feats]."""
    *lead, n_inst, n_feats = features.shape
    batch = int(math.prod(lead))  # math.prod([]) == 1
    R = n_inst * n_feats
    in_dtype = features.dtype
    itemsize = jnp.dtype(in_dtype).itemsize

    # --- wrapper-side layout plumbing (no batch-sized compute hoisted) -------
    # Per-instance Gram matrix: out[b,i,f] = sum_g G[i,f,g] * x[b,i,g]
    w32 = W.astype(jnp.float32)
    G = jnp.einsum("ikf,ikg->ifg", w32, w32)                       # (inst, F, F)
    eye = jnp.eye(n_inst, dtype=jnp.float32)
    M = jnp.einsum("ij,ifg->ifjg", eye, G).reshape(R, R)           # block-diagonal
    b2 = b_final.astype(jnp.float32).reshape(R, 1)

    # Lane-dense activations: [inst*feats, batch]
    x3 = features.reshape(batch, n_inst, n_feats)
    x2 = jnp.transpose(x3, (1, 2, 0)).reshape(R, batch)

    # Pad batch so the lane dim is a multiple of 128 and of the block size.
    block_batch = max(128, _round_up(block_batch, 128))
    batch_p = _round_up(max(batch, 1), 128)
    tb = min(block_batch, batch_p)
    batch_p = _round_up(batch_p, tb)
    if batch_p != batch:
        x2 = jnp.pad(x2, ((0, 0), (0, batch_p - batch)))

    grid = (batch_p // tb,)

    flops = 2 * R * R * batch_p + 2 * R * batch_p
    bytes_accessed = 2 * R * batch_p * itemsize + M.size * 4 + R * 4

    out2 = pl.pallas_call(
        _toy_model_kernel,
        out_shape=jax.ShapeDtypeStruct((R, batch_p), in_dtype),
        grid=grid,
        in_specs=[
            pl.BlockSpec((R, R), lambda i: (0, 0)),    # M: resident
            pl.BlockSpec((R, 1), lambda i: (0, 0)),    # bias: resident
            pl.BlockSpec((R, tb), lambda i: (0, i)),   # x: tiled over batch (lanes)
        ],
        out_specs=pl.BlockSpec((R, tb), lambda i: (0, i)),
        compiler_params=pltpu.CompilerParams(
            dimension_semantics=("parallel",),
        ),
        cost_estimate=pl.CostEstimate(
            flops=flops, transcendentals=0, bytes_accessed=bytes_accessed
        ),
    )(M, b2, x2)

    out = out2[:, :batch].reshape(n_inst, n_feats, batch)
    out = jnp.transpose(out, (2, 0, 1)).reshape(features.shape)
    return out


toy_model_forward_jit = jax.jit(toy_model_forward, static_argnames=("block_batch",))


def _reference_forward(features, W, b_final):
    h = jnp.einsum("bif,ihf->bih", features, W)
    out = jnp.einsum("bih,ihf->bif", h, W)
    return jax.nn.relu(out + b_final[None])


if __name__ == "__main__":
    # Config defaults from the module: n_features=5, d_hidden=2, n_inst=8
    n_inst, n_features, d_hidden = 8, 5, 2

    key = jax.random.PRNGKey(0)
    k_w, k_b, k_x1, k_x2 = jax.random.split(key, 4)

    # Deterministic xavier_normal_-style init for W of shape (inst, hidden, feats).
    fan_in = d_hidden * n_features
    fan_out = n_inst * n_features
    std = (2.0 / (fan_in + fan_out)) ** 0.5
    W = std * jax.random.normal(k_w, (n_inst, d_hidden, n_features), dtype=jnp.float32)
    b_final = 0.05 * jax.random.normal(k_b, (n_inst, n_features), dtype=jnp.float32)

    # Test 1: tiny batch (single grid step, batch padded to 128 lanes).
    batch = 8
    features = jax.random.uniform(k_x1, (batch, n_inst, n_features), dtype=jnp.float32)
    out = jax.block_until_ready(toy_model_forward_jit(features, W, b_final))
    ref = _reference_forward(features, W, b_final)
    assert out.shape == (batch, n_inst, n_features)
    assert jnp.allclose(out, ref, atol=1e-4, rtol=1e-4), "mismatch vs reference (batch=8)"

    # Test 2: exercise the batch grid (grid > 1) with a small block size.
    batch2 = 300
    features2 = jax.random.uniform(k_x2, (batch2, n_inst, n_features), dtype=jnp.float32)
    out2 = jax.block_until_ready(
        toy_model_forward_jit(features2, W, b_final, block_batch=128)
    )
    ref2 = _reference_forward(features2, W, b_final)
    assert out2.shape == (batch2, n_inst, n_features)
    assert jnp.allclose(out2, ref2, atol=1e-4, rtol=1e-4), "mismatch vs reference (batch=300)"

    print("KERNEL_OK")
</pallas_src>

<mosaic_0001>
module attributes {stable_mosaic.version = 11 : i64} {
  func.func @_toy_model_kernel(%arg0: i32, %arg1: memref<40x40xf32, #tpu.memory_space<vmem>>, %arg2: memref<40x1xf32, #tpu.memory_space<vmem>>, %arg3: memref<40x128xf32, #tpu.memory_space<vmem>>, %arg4: memref<40x128xf32, #tpu.memory_space<vmem>>) attributes {dimension_semantics = [#tpu.dimension_semantics<parallel>], iteration_bounds = array<i64: 1>, scalar_prefetch = 0 : i64, scratch_operands = 0 : i64, tpu.core_type = #tpu.core_type<tc>, window_params = [{pipeline_mode = #tpu.pipeline_mode<synchronous>, transform_indices = @transform_0, window_bounds = array<i64: 40, 40>}, {pipeline_mode = #tpu.pipeline_mode<synchronous>, transform_indices = @transform_1, window_bounds = array<i64: 40, 1>}, {transform_indices = @transform_2, window_bounds = array<i64: 40, 128>}, {transform_indices = @transform_3, window_bounds = array<i64: 40, 128>}]} {
    %c0 = arith.constant 0 : index
    %c0_0 = arith.constant 0 : index
    %0 = vector.load %arg3[%c0, %c0_0] : memref<40x128xf32, #tpu.memory_space<vmem>>, vector<40x128xf32>
    %c0_1 = arith.constant 0 : index
    %c0_2 = arith.constant 0 : index
    %1 = vector.load %arg1[%c0_1, %c0_2] : memref<40x40xf32, #tpu.memory_space<vmem>>, vector<40x40xf32>
    %cst = arith.constant dense<0.000000e+00> : vector<40x128xf32>
    %2 = tpu.matmul %1, %0, %cst {dimension_numbers = #tpu.dot_dimension_numbers<[1], [0], [0], [1], [0, 0, 1, 1], [], []>, precision = #tpu.contract_precision<fp32>} : vector<40x40xf32>, vector<40x128xf32>, vector<40x128xf32> -> vector<40x128xf32>
    %c0_3 = arith.constant 0 : index
    %c0_4 = arith.constant 0 : index
    %3 = vector.load %arg2[%c0_3, %c0_4] : memref<40x1xf32, #tpu.memory_space<vmem>>, vector<40x1xf32>
    %4 = vector.broadcast %3 : vector<40x1xf32> to vector<40x128xf32>
    %5 = arith.addf %2, %4 : vector<40x128xf32>
    %cst_5 = arith.constant 0.000000e+00 : f32
    %6 = vector.broadcast %cst_5 : f32 to vector<40x128xf32>
    %7 = arith.maximumf %5, %6 : vector<40x128xf32>
    %c0_6 = arith.constant 0 : index
    %c0_7 = arith.constant 0 : index
    %8 = vector.load %arg4[%c0_6, %c0_7] : memref<40x128xf32, #tpu.memory_space<vmem>>, vector<40x128xf32>
    tpu.vector_store %arg4[%c0_6, %c0_7], %7 {strides = array<i32>} : memref<40x128xf32, #tpu.memory_space<vmem>>, vector<40x128xf32>,
    return
  }
  func.func @transform_0(%arg0: i32) -> (i32, i32) {
    %c0_i32 = arith.constant 0 : i32
    %c0_i32_0 = arith.constant 0 : i32
    %c0_i32_1 = arith.constant 0 : i32
    return %c0_i32, %c0_i32_0 : i32, i32
  }
  func.func @transform_1(%arg0: i32) -> (i32, i32) {
    %c0_i32 = arith.constant 0 : i32
    %c0_i32_0 = arith.constant 0 : i32
    %c0_i32_1 = arith.constant 0 : i32
    return %c0_i32, %c0_i32_0 : i32, i32
  }
  func.func @transform_2(%arg0: i32) -> (i32, i32) {
    %c0_i32 = arith.constant 0 : i32
    %c0_i32_0 = arith.constant 0 : i32
    return %c0_i32, %arg0 : i32, i32
  }
  func.func @transform_3(%arg0: i32) -> (i32, i32) {
    %c0_i32 = arith.constant 0 : i32
    %c0_i32_0 = arith.constant 0 : i32
    return %c0_i32, %arg0 : i32, i32
  }
}

</mosaic_0001>

<llo_original>
// kernel: toy_model_forward.1
$region0: #{toy_model_forward.1}
  #allocation0 [shape = 'u32[]', space=smem, size = 0x4, offset = 0x4, fixed_abs, tag = 'smem constant byte address 0x4 - core index']
  #allocation1 [shape = 'u32[72,128]{1,0:T(1,128)}', space=vmem, size = 0x9000, scoped, tag = 'internal scratch']
  %s0 = inlined_call_operand.vmem [shape: f32[40,40], index: 0, kind: input, shape index: {}]
  %s1 = inlined_call_operand.vmem [shape: f32[40,1], index: 1, kind: input, shape index: {}]
  %s2 = inlined_call_operand.vmem [shape: f32[40,128], index: 2, kind: input, shape index: {}]
  %s3 = inlined_call_operand.vmem [shape: f32[40,128], index: 3, kind: output, shape index: {}]
  %s4 = sld [smem:[#allocation0]]
  $region22: #{toy_model_forward.1} parent=0
    _
  %s6 = ssub.s32 1, %s4
  %s7 = scalar_select 0, %s6, %s4
  // Predicated region
  $region2: #{toy_model_forward.1} parent=0 // pred_check
    _
  $region3: #{toy_model_forward.1} parent=0 // pred_check_branch
    %9 = sbr.rel (0) target = $region5
  $region4: #{toy_model_forward.1} parent=0 // pred_region
    _
  $region5: #{toy_model_forward.1} parent=0 // pred_fallthru
    _
  // Predicated region
  $region6: #{toy_model_forward.1} parent=0 // pred_check
    _
  $region7: #{toy_model_forward.1} parent=0 // pred_check_branch
    %11 = sbr.rel (0) target = $region9
  $region8: #{toy_model_forward.1} parent=0 // pred_region
    _
  $region9: #{toy_model_forward.1} parent=0 // pred_fallthru
    _
  // Predicated region
  $region10: #{toy_model_forward.1} parent=0 // pred_check
    _
  $region11: #{toy_model_forward.1} parent=0 // pred_check_branch
    %13 = sbr.rel (0) target = $region13
  $region12: #{toy_model_forward.1} parent=0 // pred_region
    _
  $region13: #{toy_model_forward.1} parent=0 // pred_fallthru
    _
  %v14 = vld [vmem:[%s2] sm:$0xff]
  %v15 = vld [vmem:[%s2 + $0x8] sm:$0xff]
  %v16 = vld [vmem:[%s2 + $0x10] sm:$0xff]
  %v17 = vld [vmem:[%s2 + $0x18] sm:$0xff]
  %v18 = vld [vmem:[%s2 + $0x20] sm:$0xff]
  %v19 = vld [vmem:[%s0] sm:$0xff]
  %v20 = vld [vmem:[%s0 + $0x8] sm:$0xff]
  %v21 = vld [vmem:[%s0 + $0x10] sm:$0xff]
  %v22 = vld [vmem:[%s0 + $0x18] sm:$0xff]
  %v23 = vld [vmem:[%s0 + $0x20] sm:$0xff]
  %v24 = vld [vmem:[%s1] sm:$0xff]
  %v25 = vld [vmem:[%s1 + $0x8] sm:$0xff]
  %v26 = vld [vmem:[%s1 + $0x10] sm:$0xff]
  %v27 = vld [vmem:[%s1 + $0x18] sm:$0xff]
  %v28 = vld [vmem:[%s1 + $0x20] sm:$0xff]
  %30 = vset.pattern.permute.xlu0 0
  %31 = vperm.xlu0 %30, %v24
  %v32 = vpop.permute.xlu0 %31
  %35 = vset.pattern.permute.xlu0 0
  %36 = vperm.xlu0 %35, %v25
  %v37 = vpop.permute.xlu0 %36
  %40 = vset.pattern.permute.xlu0 0
  %41 = vperm.xlu0 %40, %v26
  %v42 = vpop.permute.xlu0 %41
  %45 = vset.pattern.permute.xlu0 0
  %46 = vperm.xlu0 %45, %v27
  %v47 = vpop.permute.xlu0 %46
  %50 = vset.pattern.permute.xlu0 0
  %51 = vperm.xlu0 %50, %v28
  %v52 = vpop.permute.xlu0 %51
  %vm54 = vcmask 326656
  %v56 = vsel %vm54, %v19, 0
  %v59 = vsel %vm54, %v20, 0
  %v62 = vsel %vm54, %v21, 0
  %v65 = vsel %vm54, %v22, 0
  %v68 = vsel %vm54, %v23, 0
  %70 = vmatpush.msra.mxu0 0.0
  %71 = vmatpush.msra.mxu0 0.0
  %72 = vmatpush.msra.mxu0 0.0
  %73 = vmatpush.msra.mxu0 0.0
  %74 = vmatpush.msra.mxu0 0.0
  %75 = vmatpush.msra.mxu0 0.0
  %76 = vmatpush.msra.mxu0 0.0
  %77 = vmatpush.msra.mxu0 0.0
  %78 = vmatpush.msra.mxu0 0.0
  %79 = vmatpush.msra.mxu0 0.0
  %80 = vmatpush.msra.mxu0 0.0
  %v81 = vand.u32 %v18, 4294901760
  %82 = vmatpush.msra.mxu0 %v81
  %v83 = vand.u32 %v17, 4294901760
  %84 = vmatpush.msra.mxu0 %v83
  %v85 = vand.u32 %v16, 4294901760
  %86 = vmatpush.msra.mxu0 %v85
  %v87 = vand.u32 %v15, 4294901760
  %88 = vmatpush.msra.mxu0 %v87
  %v89 = vand.u32 %v14, 4294901760
  %90 = vmatpush.msra.mxu0 %v89
  %v91 = vand.u32 %v56, 4294901760
  %v92 = vsub.f32 %v56, %v91
  %v93 = vand.u32 %v92, 4294901760
  %v94 = vsub.f32 %v92, %v93
  %v95 = vand.u32 %v94, 4294901760
  %96 = vmatmul.f32.gmra.mxu0 %v95
  %v97 = vpop.f32.mrf.mxu0
  %v98 = vadd.f32 %v32, %v97
  %v99 = vand.u32 %v59, 4294901760
  %v100 = vsub.f32 %v59, %v99
  %v101 = vand.u32 %v100, 4294901760
  %v102 = vsub.f32 %v100, %v101
  %v103 = vand.u32 %v102, 4294901760
  %104 = vmatmul.f32.gmra.mxu0 %v103
  %v105 = vpop.f32.mrf.mxu0
  %v106 = vadd.f32 %v37, %v105
  %v107 = vand.u32 %v62, 4294901760
  %v108 = vsub.f32 %v62, %v107
  %v109 = vand.u32 %v108, 4294901760
  %v110 = vsub.f32 %v108, %v109
  %v111 = vand.u32 %v110, 4294901760
  %112 = vmatmul.f32.gmra.mxu0 %v111
  %v113 = vpop.f32.mrf.mxu0
  %v114 = vadd.f32 %v42, %v113
  %v115 = vand.u32 %v65, 4294901760
  %v116 = vsub.f32 %v65, %v115
  %v117 = vand.u32 %v116, 4294901760
  %v118 = vsub.f32 %v116, %v117
  %v119 = vand.u32 %v118, 4294901760
  %120 = vmatmul.f32.gmra.mxu0 %v119
  %v121 = vpop.f32.mrf.mxu0
  %v122 = vadd.f32 %v47, %v121
  %v123 = vand.u32 %v68, 4294901760
  %v124 = vsub.f32 %v68, %v123
  %v125 = vand.u32 %v124, 4294901760
  %v126 = vsub.f32 %v124, %v125
  %v127 = vand.u32 %v126, 4294901760
  %128 = vmatmul.f32.gmra.mxu0 %v127
  %v129 = vpop.f32.mrf.mxu0
  %v130 = vadd.f32 %v52, %v129
  %131 = vdwg.mxu0
  %132 = vmatpush.msra.mxu0 0.0
  %133 = vmatpush.msra.mxu0 0.0
  %134 = vmatpush.msra.mxu0 0.0
  %135 = vmatpush.msra.mxu0 0.0
  %136 = vmatpush.msra.mxu0 0.0
  %137 = vmatpush.msra.mxu0 0.0
  %138 = vmatpush.msra.mxu0 0.0
  %139 = vmatpush.msra.mxu0 0.0
  %140 = vmatpush.msra.mxu0 0.0
  %141 = vmatpush.msra.mxu0 0.0
  %142 = vmatpush.msra.mxu0 0.0
  %v143 = vand.u32 %v18, 4294901760
  %v144 = vsub.f32 %v18, %v143
  %v145 = vand.u32 %v144, 4294901760
  %v146 = vsub.f32 %v144, %v145
  %v147 = vand.u32 %v146, 4294901760
  %148 = vmatpush.msra.mxu0 %v147
  %v149 = vand.u32 %v17, 4294901760
  %v150 = vsub.f32 %v17, %v149
  %v151 = vand.u32 %v150, 4294901760
  %v152 = vsub.f32 %v150, %v151
  %v153 = vand.u32 %v152, 4294901760
  %154 = vmatpush.msra.mxu0 %v153
  %v155 = vand.u32 %v16, 4294901760
  %v156 = vsub.f32 %v16, %v155
  %v157 = vand.u32 %v156, 4294901760
  %v158 = vsub.f32 %v156, %v157
  %v159 = vand.u32 %v158, 4294901760
  %160 = vmatpush.msra.mxu0 %v159
  %v161 = vand.u32 %v15, 4294901760
  %v162 = vsub.f32 %v15, %v161
  %v163 = vand.u32 %v162, 4294901760
  %v164 = vsub.f32 %v162, %v163
  %v165 = vand.u32 %v164, 4294901760
  %166 = vmatpush.msra.mxu0 %v165
  %v167 = vand.u32 %v14, 4294901760
  %v168 = vsub.f32 %v14, %v167
  %v169 = vand.u32 %v168, 4294901760
  %v170 = vsub.f32 %v168, %v169
  %v171 = vand.u32 %v170, 4294901760
  %172 = vmatpush.msra.mxu0 %v171
  %v173 = vand.u32 %v56, 4294901760
  %174 = vmatmul.f32.gmra.mxu0 %v173
  %v175 = vpop.f32.mrf.mxu0
  %v176 = vadd.f32 %v98, %v175
  %v177 = vand.u32 %v59, 4294901760
  %178 = vmatmul.f32.gmra.mxu0 %v177
  %v179 = vpop.f32.mrf.mxu0
  %v180 = vadd.f32 %v106, %v179
  %v181 = vand.u32 %v62, 4294901760
  %182 = vmatmul.f32.gmra.mxu0 %v181
  %v183 = vpop.f32.mrf.mxu0
  %v184 = vadd.f32 %v114, %v183
  %v185 = vand.u32 %v65, 4294901760
  %186 = vmatmul.f32.gmra.mxu0 %v185
  %v187 = vpop.f32.mrf.mxu0
  %v188 = vadd.f32 %v122, %v187
  %v189 = vand.u32 %v68, 4294901760
  %190 = vmatmul.f32.gmra.mxu0 %v189
  %v191 = vpop.f32.mrf.mxu0
  %v192 = vadd.f32 %v130, %v191
  %193 = vdwg.mxu0
  %194 = vmatpush.msra.mxu0 0.0
  %195 = vmatpush.msra.mxu0 0.0
  %196 = vmatpush.msra.mxu0 0.0
  %197 = vmatpush.msra.mxu0 0.0
  %198 = vmatpush.msra.mxu0 0.0
  %199 = vmatpush.msra.mxu0 0.0
  %200 = vmatpush.msra.mxu0 0.0
  %201 = vmatpush.msra.mxu0 0.0
  %202 = vmatpush.msra.mxu0 0.0
  %203 = vmatpush.msra.mxu0 0.0
  %204 = vmatpush.msra.mxu0 0.0
  %v205 = vand.u32 %v18, 4294901760
  %v206 = vsub.f32 %v18, %v205
  %207 = vmatpush.msra.mxu0 %v206
  %v208 = vand.u32 %v17, 4294901760
  %v209 = vsub.f32 %v17, %v208
  %210 = vmatpush.msra.mxu0 %v209
  %v211 = vand.u32 %v16, 4294901760
  %v212 = vsub.f32 %v16, %v211
  %213 = vmatpush.msra.mxu0 %v212
  %v214 = vand.u32 %v15, 4294901760
  %v215 = vsub.f32 %v15, %v214
  %216 = vmatpush.msra.mxu0 %v215
  %v217 = vand.u32 %v14, 4294901760
  %v218 = vsub.f32 %v14, %v217
  %219 = vmatpush.msra.mxu0 %v218
  %v220 = vand.u32 %v56, 4294901760
  %v221 = vsub.f32 %v56, %v220
  %222 = vmatmul.f32.gmra.mxu0 %v221
  %v223 = vpop.f32.mrf.mxu0
  %v224 = vadd.f32 %v176, %v223
  %v225 = vand.u32 %v59, 4294901760
  %v226 = vsub.f32 %v59, %v225
  %227 = vmatmul.f32.gmra.mxu0 %v226
  %v228 = vpop.f32.mrf.mxu0
  %v229 = vadd.f32 %v180, %v228
  %v230 = vand.u32 %v62, 4294901760
  %v231 = vsub.f32 %v62, %v230
  %232 = vmatmul.f32.gmra.mxu0 %v231
  %v233 = vpop.f32.mrf.mxu0
  %v234 = vadd.f32 %v184, %v233
  %v235 = vand.u32 %v65, 4294901760
  %v236 = vsub.f32 %v65, %v235
  %237 = vmatmul.f32.gmra.mxu0 %v236
  %v238 = vpop.f32.mrf.mxu0
  %v239 = vadd.f32 %v188, %v238
  %v240 = vand.u32 %v68, 4294901760
  %v241 = vsub.f32 %v68, %v240
  %242 = vmatmul.f32.gmra.mxu0 %v241
  %v243 = vpop.f32.mrf.mxu0
  %v244 = vadd.f32 %v192, %v243
  %245 = vdwg.mxu0
  %246 = vmatpush.msra.mxu0 0.0
  %247 = vmatpush.msra.mxu0 0.0
  %248 = vmatpush.msra.mxu0 0.0
  %249 = vmatpush.msra.mxu0 0.0
  %250 = vmatpush.msra.mxu0 0.0
  %251 = vmatpush.msra.mxu0 0.0
  %252 = vmatpush.msra.mxu0 0.0
  %253 = vmatpush.msra.mxu0 0.0
  %254 = vmatpush.msra.mxu0 0.0
  %255 = vmatpush.msra.mxu0 0.0
  %256 = vmatpush.msra.mxu0 0.0
  %v257 = vand.u32 %v18, 4294901760
  %258 = vmatpush.msra.mxu0 %v257
  %v259 = vand.u32 %v17, 4294901760
  %260 = vmatpush.msra.mxu0 %v259
  %v261 = vand.u32 %v16, 4294901760
  %262 = vmatpush.msra.mxu0 %v261
  %v263 = vand.u32 %v15, 4294901760
  %264 = vmatpush.msra.mxu0 %v263
  %v265 = vand.u32 %v14, 4294901760
  %266 = vmatpush.msra.mxu0 %v265
  %v267 = vand.u32 %v56, 4294901760
  %v268 = vsub.f32 %v56, %v267
  %v269 = vand.u32 %v268, 4294901760
  %270 = vmatmul.f32.gmra.mxu0 %v269
  %v271 = vpop.f32.mrf.mxu0
  %v272 = vadd.f32 %v224, %v271
  %v273 = vand.u32 %v59, 4294901760
  %v274 = vsub.f32 %v59, %v273
  %v275 = vand.u32 %v274, 4294901760
  %276 = vmatmul.f32.gmra.mxu0 %v275
  %v277 = vpop.f32.mrf.mxu0
  %v278 = vadd.f32 %v229, %v277
  %v279 = vand.u32 %v62, 4294901760
  %v280 = vsub.f32 %v62, %v279
  %v281 = vand.u32 %v280, 4294901760
  %282 = vmatmul.f32.gmra.mxu0 %v281
  %v283 = vpop.f32.mrf.mxu0
  %v284 = vadd.f32 %v234, %v283
  %v285 = vand.u32 %v65, 4294901760
  %v286 = vsub.f32 %v65, %v285
  %v287 = vand.u32 %v286, 4294901760
  %288 = vmatmul.f32.gmra.mxu0 %v287
  %v289 = vpop.f32.mrf.mxu0
  %v290 = vadd.f32 %v239, %v289
  %v291 = vand.u32 %v68, 4294901760
  %v292 = vsub.f32 %v68, %v291
  %v293 = vand.u32 %v292, 4294901760
  %294 = vmatmul.f32.gmra.mxu0 %v293
  %v295 = vpop.f32.mrf.mxu0
  %v296 = vadd.f32 %v244, %v295
  %297 = vdwg.mxu0
  %298 = vmatpush.msra.mxu0 0.0
  %299 = vmatpush.msra.mxu0 0.0
  %300 = vmatpush.msra.mxu0 0.0
  %301 = vmatpush.msra.mxu0 0.0
  %302 = vmatpush.msra.mxu0 0.0
  %303 = vmatpush.msra.mxu0 0.0
  %304 = vmatpush.msra.mxu0 0.0
  %305 = vmatpush.msra.mxu0 0.0
  %306 = vmatpush.msra.mxu0 0.0
  %307 = vmatpush.msra.mxu0 0.0
  %308 = vmatpush.msra.mxu0 0.0
  %v309 = vand.u32 %v18, 4294901760
  %v310 = vsub.f32 %v18, %v309
  %v311 = vand.u32 %v310, 4294901760
  %312 = vmatpush.msra.mxu0 %v311
  %v313 = vand.u32 %v17, 4294901760
  %v314 = vsub.f32 %v17, %v313
  %v315 = vand.u32 %v314, 4294901760
  %316 = vmatpush.msra.mxu0 %v315
  %v317 = vand.u32 %v16, 4294901760
  %v318 = vsub.f32 %v16, %v317
  %v319 = vand.u32 %v318, 4294901760
  %320 = vmatpush.msra.mxu0 %v319
  %v321 = vand.u32 %v15, 4294901760
  %v322 = vsub.f32 %v15, %v321
  %v323 = vand.u32 %v322, 4294901760
  %324 = vmatpush.msra.mxu0 %v323
  %v325 = vand.u32 %v14, 4294901760
  %v326 = vsub.f32 %v14, %v325
  %v327 = vand.u32 %v326, 4294901760
  %328 = vmatpush.msra.mxu0 %v327
  %v329 = vand.u32 %v56, 4294901760
  %330 = vmatmul.f32.gmra.mxu0 %v329
  %v331 = vpop.f32.mrf.mxu0
  %v332 = vadd.f32 %v272, %v331
  %v333 = vand.u32 %v59, 4294901760
  %334 = vmatmul.f32.gmra.mxu0 %v333
  %v335 = vpop.f32.mrf.mxu0
  %v336 = vadd.f32 %v278, %v335
  %v337 = vand.u32 %v62, 4294901760
  %338 = vmatmul.f32.gmra.mxu0 %v337
  %v339 = vpop.f32.mrf.mxu0
  %v340 = vadd.f32 %v284, %v339
  %v341 = vand.u32 %v65, 4294901760
  %342 = vmatmul.f32.gmra.mxu0 %v341
  %v343 = vpop.f32.mrf.mxu0
  %v344 = vadd.f32 %v290, %v343
  %v345 = vand.u32 %v68, 4294901760
  %346 = vmatmul.f32.gmra.mxu0 %v345
  %v347 = vpop.f32.mrf.mxu0
  %v348 = vadd.f32 %v296, %v347
  %349 = vdwg.mxu0
  %350 = vmatpush.msra.mxu0 0.0
  %351 = vmatpush.msra.mxu0 0.0
  %352 = vmatpush.msra.mxu0 0.0
  %353 = vmatpush.msra.mxu0 0.0
  %354 = vmatpush.msra.mxu0 0.0
  %355 = vmatpush.msra.mxu0 0.0
  %356 = vmatpush.msra.mxu0 0.0
  %357 = vmatpush.msra.mxu0 0.0
  %358 = vmatpush.msra.mxu0 0.0
  %359 = vmatpush.msra.mxu0 0.0
  %360 = vmatpush.msra.mxu0 0.0
  %v361 = vand.u32 %v18, 4294901760
  %362 = vmatpush.msra.mxu0 %v361
  %v363 = vand.u32 %v17, 4294901760
  %364 = vmatpush.msra.mxu0 %v363
  %v365 = vand.u32 %v16, 4294901760
  %366 = vmatpush.msra.mxu0 %v365
  %v367 = vand.u32 %v15, 4294901760
  %368 = vmatpush.msra.mxu0 %v367
  %v369 = vand.u32 %v14, 4294901760
  %370 = vmatpush.msra.mxu0 %v369
  %v371 = vand.u32 %v56, 4294901760
  %372 = vmatmul.f32.gmra.mxu0 %v371
  %v373 = vpop.f32.mrf.mxu0
  %v374 = vadd.f32 %v332, %v373
  %v375 = vand.u32 %v59, 4294901760
  %376 = vmatmul.f32.gmra.mxu0 %v375
  %v377 = vpop.f32.mrf.mxu0
  %v378 = vadd.f32 %v336, %v377
  %v379 = vand.u32 %v62, 4294901760
  %380 = vmatmul.f32.gmra.mxu0 %v379
  %v381 = vpop.f32.mrf.mxu0
  %v382 = vadd.f32 %v340, %v381
  %v383 = vand.u32 %v65, 4294901760
  %384 = vmatmul.f32.gmra.mxu0 %v383
  %v385 = vpop.f32.mrf.mxu0
  %v386 = vadd.f32 %v344, %v385
  %v387 = vand.u32 %v68, 4294901760
  %388 = vmatmul.f32.gmra.mxu0 %v387
  %v389 = vpop.f32.mrf.mxu0
  %v390 = vadd.f32 %v348, %v389
  %391 = vdwg.mxu0
  %v392 = vmax.f32 %v374, 0.0
  %v393 = vmax.f32 %v378, 0.0
  %v394 = vmax.f32 %v382, 0.0
  %v395 = vmax.f32 %v386, 0.0
  %v396 = vmax.f32 %v390, 0.0
  %397 = vst [vmem:[%s3] sm:$0xff] %v392
  %398 = vst [vmem:[%s3 + $0x8] sm:$0xff] %v393
  %399 = vst [vmem:[%s3 + $0x10] sm:$0xff] %v394
  %400 = vst [vmem:[%s3 + $0x18] sm:$0xff] %v395
  %401 = vst [vmem:[%s3 + $0x20] sm:$0xff] %v396
  // Predicated region
  $region14: #{toy_model_forward.1} parent=0 // pred_check
    _
  $region15: #{toy_model_forward.1} parent=0 // pred_check_branch
    %403 = sbr.rel (0) target = $region17
  $region16: #{toy_model_forward.1} parent=0 // pred_region
    _
  $region17: #{toy_model_forward.1} parent=0 // pred_fallthru
    _
  // Predicated region
  $region18: #{toy_model_forward.1} parent=0 // pred_check
    _
  $region19: #{toy_model_forward.1} parent=0 // pred_check_branch
    %405 = sbr.rel (0) target = $region21
  $region20: #{toy_model_forward.1} parent=0 // pred_region
    _
  $region21: #{toy_model_forward.1} parent=0 // pred_fallthru
    _

</llo_original>
